<compile_context>
chip_gen: v6e
topology: v6e:2x2x1
jax: 0.10.0
libtpu: 0.0.40
codegen_flags: <defaults>
</compile_context>

<pallas_src>
import functools
import math

import jax
import jax.numpy as jnp
from jax import lax
from jax.experimental import pallas as pl
from jax.experimental.pallas import tpu as pltpu


def _round_up(x, m):
    return ((x + m - 1) // m) * m


# ----------------------------------------------------------------------------
# Pallas kernel: fused actor+critic MLP + Normal log_prob / entropy epilogue
# ----------------------------------------------------------------------------
def _eval_kernel(A,
                 niv_min, niv_max,        # -0.5 / scale**2      per std branch
                 lpc_min, lpc_max,        # -log(scale) - 0.5*log(2*pi)
                 ent_min, ent_max,        # 0.5 + 0.5*log(2*pi) + log(scale)
                 x_ref, ap_ref,
                 w1_ref, b1_ref, w2_ref, b2_ref, w3_ref, b3_ref,
                 out_ref):
    # Fused actor|critic MLP: bf16 inputs on the MXU, f32 accumulate, f32 tanh.
    x = x_ref[...]                                                  # (TB, obs) bf16
    h = jnp.tanh(jnp.dot(x, w1_ref[...],
                         preferred_element_type=jnp.float32) + b1_ref[...])
    h = jnp.tanh(jnp.dot(h.astype(jnp.bfloat16), w2_ref[...],
                         preferred_element_type=jnp.float32) + b2_ref[...])
    head = jnp.dot(h.astype(jnp.bfloat16), w3_ref[...],
                   preferred_element_type=jnp.float32) + b3_ref[...]  # (TB, W)
    # head lanes: [0,A) = action_mean, lane A = value, lanes > A = 0.

    ap = ap_ref[...]                                                # (TB, W) f32
    # ap lanes:   [0,A) = action,      lane A = std_obs indicator, lanes > A = 0.

    # get_std(): std = std_max if std_obs == 0 else std_min; torch builds
    # Normal(mean, std**2) -> scale = std**2.  All Normal constants are
    # precomputed per branch at trace time (no in-kernel log / divide).
    # (Exact float compare matches the torch reference; std_obs is a 0/1 flag.)
    use_max = ap[:, A:A + 1] == 0.0                                 # (TB, 1)
    niv = jnp.where(use_max, jnp.float32(niv_max), jnp.float32(niv_min))
    lpc = jnp.where(use_max, jnp.float32(lpc_max), jnp.float32(lpc_min))
    ent = jnp.where(use_max, jnp.float32(ent_max), jnp.float32(ent_min))

    diff = ap - head
    logp = diff * diff * niv + lpc                                  # valid on lanes < A

    lane = lax.broadcasted_iota(jnp.int32, head.shape, 1)
    out_ref[...] = jnp.where(
        lane < A, logp,
        jnp.where(lane == A, head,
                  jnp.where(lane == A + 1,
                            jnp.broadcast_to(ent, head.shape),
                            jnp.float32(0.0))))


# ----------------------------------------------------------------------------
# Wrapper
# ----------------------------------------------------------------------------
def actor_critic_evaluate(params, state, action, std_obs,
                          std_min=0.001, std_max=0.2):
    """Returns (action_logprob, state_value, dist_entropy) like evaluate()."""
    A = params["wa3"].shape[1]
    if action.ndim == 1:                       # torch: action_dim == 1 reshape
        action = action.reshape(-1, A)
    B, obs_dim = state.shape
    H1 = params["wa1"].shape[1]
    H2 = params["wa2"].shape[1]
    out_w = _round_up(A + 2, 8)                # packed [logp | value | entropy | pad]

    f32, bf16 = jnp.float32, jnp.bfloat16

    # ---- fuse actor|critic weights at trace time (bf16 for the MXU) ----
    w1 = jnp.concatenate([params["wa1"], params["wc1"]], axis=1).astype(bf16)
    b1 = jnp.concatenate([params["ba1"], params["bc1"]], axis=1).astype(f32)
    # TODO(synk): once 2*H exceeds one MXU tile (128 on v5e, 256 on v6e/v7x) the
    # zero-padded block-diagonal doubles MXU work / weight VMEM; switch layers
    # 2/3 to separate actor / critic dots in that regime.
    w2 = jnp.zeros((2 * H1, 2 * H2), f32)
    w2 = w2.at[:H1, :H2].set(params["wa2"]).at[H1:, H2:].set(params["wc2"])
    w2 = w2.astype(bf16)
    b2 = jnp.concatenate([params["ba2"], params["bc2"]], axis=1).astype(f32)
    # Head built directly at the packed output width (lane-dense epilogue).
    w3 = jnp.zeros((2 * H2, out_w), f32)
    w3 = w3.at[:H2, :A].set(params["wa3"]).at[H2:, A:A + 1].set(params["wc3"])
    w3 = w3.astype(bf16)
    b3 = jnp.zeros((1, out_w), f32)
    b3 = b3.at[:, :A].set(params["ba3"]).at[:, A:A + 1].set(params["bc3"])

    # ---- streamed inputs: bf16 state + packed [action | std_obs | 0] (f32) ----
    state_b = state.astype(bf16)
    std_col = jnp.asarray(std_obs, f32).reshape(B, 1)
    ap = jnp.zeros((B, out_w), f32)
    ap = ap.at[:, :A].set(action.astype(f32)).at[:, A:A + 1].set(std_col)

    # ---- trace-time Normal constants per std branch (scale = std**2) ----
    def _consts(std):
        scale = float(std) * float(std)
        var = scale * scale
        half_log_2pi = 0.5 * math.log(2.0 * math.pi)
        return (-0.5 / var,
                -math.log(scale) - half_log_2pi,
                0.5 + half_log_2pi + math.log(scale))

    niv_min, lpc_min, ent_min = _consts(std_min)
    niv_max, lpc_max, ent_max = _consts(std_max)

    # ---- batch tiling (pipelined, megacore-parallel, no wrapper-side pad) ----
    TB_max = 4096
    if B <= TB_max:
        TB = B                                  # single block == full batch dim
        if B >= 2048 and B % 32 == 0:
            TB = B // 2                         # >=2 grid steps for v7x's 2 TCs
    else:
        TB = TB_max                             # multiple of 16 (bf16 sublanes)
    grid = (pl.cdiv(B, TB),)                    # ragged tail -> partial block

    kernel = functools.partial(_eval_kernel, A,
                               niv_min, niv_max, lpc_min, lpc_max,
                               ent_min, ent_max)

    def stream_spec(width):
        return pl.BlockSpec((TB, width), lambda i: (i, 0))

    def weight_spec(arr):
        return pl.BlockSpec(arr.shape, lambda i: (0, 0))

    in_specs = [stream_spec(obs_dim), stream_spec(out_w),
                weight_spec(w1), weight_spec(b1),
                weight_spec(w2), weight_spec(b2),
                weight_spec(w3), weight_spec(b3)]
    out_specs = pl.BlockSpec((TB, out_w), lambda i: (i, 0))

    # ---- VMEM budget: streamed double-buffers + resident weights + temps ----
    stream_bytes = 2 * TB * (obs_dim * 2 + out_w * 4) + 2 * TB * out_w * 4
    weight_bytes = 2 * ((w1.size + w2.size + w3.size) * 2
                        + (b1.size + b2.size + b3.size) * 4)
    interm_bytes = 2 * TB * (2 * H1 + 2 * H2 + 2 * out_w) * 4
    vmem_limit = int(min(48 * 2 ** 20,
                         stream_bytes + weight_bytes + interm_bytes + (8 << 20)))

    # ---- advisory cost estimate so XLA schedules neighbors around this call ----
    flops = 2 * B * (obs_dim * 2 * H1 + 2 * H1 * 2 * H2 + 2 * H2 * out_w) \
        + 8 * B * out_w
    transcendentals = 2 * B * (H1 + H2)
    bytes_accessed = (B * (obs_dim * 2 + 2 * out_w * 4)
                      + (w1.size + w2.size + w3.size) * 2
                      + (b1.size + b2.size + b3.size) * 4)

    out = pl.pallas_call(
        kernel,
        grid=grid,
        in_specs=in_specs,
        out_specs=out_specs,
        out_shape=jax.ShapeDtypeStruct((B, out_w), jnp.float32),
        compiler_params=pltpu.CompilerParams(
            dimension_semantics=("parallel",),
            vmem_limit_bytes=vmem_limit),
        cost_estimate=pl.CostEstimate(flops=int(flops),
                                      transcendentals=int(transcendentals),
                                      bytes_accessed=int(bytes_accessed)),
    )(state_b, ap, w1, b1, w2, b2, w3, b3)

    logp = out[:, :A]
    value = out[:, A]                                    # torch.squeeze -> (B,)
    entropy = jnp.broadcast_to(out[:, A + 1:A + 2], (B, A))
    return logp, value, entropy


# ----------------------------------------------------------------------------
# Deterministic parameter init (mimics nn.Linear default U(-1/sqrt(fan_in), ..))
# ----------------------------------------------------------------------------
def _init_linear(key, fan_in, fan_out):
    kw, kb = jax.random.split(key)
    bound = 1.0 / jnp.sqrt(jnp.float32(fan_in))
    w = jax.random.uniform(kw, (fan_in, fan_out), jnp.float32, -bound, bound)
    b = jax.random.uniform(kb, (1, fan_out), jnp.float32, -bound, bound)
    return w, b


def init_params(key, obs_dim, action_dim, layer_size):
    ks = jax.random.split(key, 6)
    p = {}
    p["wa1"], p["ba1"] = _init_linear(ks[0], obs_dim, layer_size[0])
    p["wa2"], p["ba2"] = _init_linear(ks[1], layer_size[0], layer_size[1])
    p["wa3"], p["ba3"] = _init_linear(ks[2], layer_size[1], action_dim)
    p["wc1"], p["bc1"] = _init_linear(ks[3], obs_dim, layer_size[0])
    p["wc2"], p["bc2"] = _init_linear(ks[4], layer_size[0], layer_size[1])
    p["wc3"], p["bc3"] = _init_linear(ks[5], layer_size[1], 1)
    return p


# ----------------------------------------------------------------------------
# Matched-precision JAX reference (bf16 matmul inputs / f32 accumulate, like
# the kernel) — keeps the check tight despite the 1/std**4 amplification that
# the torch Normal(mean, var) semantics introduces for std_min.
# ----------------------------------------------------------------------------
def _reference(params, state, action, std_obs, std_min=0.001, std_max=0.2):
    bf16 = jnp.bfloat16

    def dot(x, w):
        return jnp.dot(x.astype(bf16), w.astype(bf16),
                       preferred_element_type=jnp.float32)

    h = jnp.tanh(dot(state, params["wa1"]) + params["ba1"])
    h = jnp.tanh(dot(h, params["wa2"]) + params["ba2"])
    mean = dot(h, params["wa3"]) + params["ba3"]
    c = jnp.tanh(dot(state, params["wc1"]) + params["bc1"])
    c = jnp.tanh(dot(c, params["wc2"]) + params["bc2"])
    value = dot(c, params["wc3"]) + params["bc3"]

    stds = jnp.where(jnp.asarray(std_obs, jnp.float32).reshape(-1, 1) == 0.0,
                     std_max, std_min).astype(jnp.float32)
    scale = stds * stds                       # torch: Normal(mean, std**2)
    var = scale * scale
    logp = (-((action - mean) ** 2) / (2.0 * var)
            - jnp.log(scale) - 0.5 * jnp.log(2.0 * jnp.pi))
    ent = jnp.broadcast_to(0.5 + 0.5 * jnp.log(2.0 * jnp.pi) + jnp.log(scale),
                           action.shape)
    return logp, jnp.squeeze(value, axis=-1), ent


if __name__ == "__main__":
    obs_dim, action_dim, layer_size = 16, 4, [32, 32]
    batch = 8
    std_min, std_max = 0.001, 0.2

    key = jax.random.PRNGKey(0)
    kp, ks, ka, kd = jax.random.split(key, 4)
    params = init_params(kp, obs_dim, action_dim, layer_size)

    state = jax.random.normal(ks, (batch, obs_dim), jnp.float32)
    action = jax.random.normal(ka, (batch, action_dim), jnp.float32)
    # std_obs: binary indicator per batch element (0 -> std_max, else std_min)
    std_obs = jax.random.bernoulli(kd, 0.5, (batch,)).astype(jnp.float32)

    logp, value, entropy = actor_critic_evaluate(params, state, action, std_obs,
                                                 std_min, std_max)
    jax.block_until_ready((logp, value, entropy))

    r_logp, r_value, r_ent = _reference(params, state, action, std_obs,
                                        std_min, std_max)
    assert logp.shape == (batch, action_dim)
    assert value.shape == (batch,)
    assert entropy.shape == (batch, action_dim)
    # logp magnitudes reach ~1/std_min**4 (torch Normal(mean, var) semantics),
    # so allow an absolute slack proportional to the largest logp magnitude.
    logp_atol = 1e-3 * float(jnp.max(jnp.abs(r_logp))) + 1e-3
    assert jnp.allclose(logp, r_logp, rtol=1e-3, atol=logp_atol)
    assert jnp.allclose(value, r_value, rtol=5e-3, atol=5e-3)
    assert jnp.allclose(entropy, r_ent, rtol=5e-3, atol=5e-3)

    print("KERNEL_OK")
</pallas_src>

<mosaic_0001>
module attributes {stable_mosaic.version = 11 : i64} {
  func.func @_eval_kernel(%arg0: i32, %arg1: memref<8x16xbf16, #tpu.memory_space<vmem>>, %arg2: memref<8x8xf32, #tpu.memory_space<vmem>>, %arg3: memref<16x64xbf16, #tpu.memory_space<vmem>>, %arg4: memref<1x64xf32, #tpu.memory_space<vmem>>, %arg5: memref<64x64xbf16, #tpu.memory_space<vmem>>, %arg6: memref<1x64xf32, #tpu.memory_space<vmem>>, %arg7: memref<64x8xbf16, #tpu.memory_space<vmem>>, %arg8: memref<1x8xf32, #tpu.memory_space<vmem>>, %arg9: memref<8x8xf32, #tpu.memory_space<vmem>>) attributes {dimension_semantics = [#tpu.dimension_semantics<parallel>], iteration_bounds = array<i64: 1>, scalar_prefetch = 0 : i64, scratch_operands = 0 : i64, tpu.core_type = #tpu.core_type<tc>, window_params = [{transform_indices = @transform_0, window_bounds = array<i64: 8, 16>}, {transform_indices = @transform_1, window_bounds = array<i64: 8, 8>}, {pipeline_mode = #tpu.pipeline_mode<synchronous>, transform_indices = @transform_2, window_bounds = array<i64: 16, 64>}, {pipeline_mode = #tpu.pipeline_mode<synchronous>, transform_indices = @transform_3, window_bounds = array<i64: 1, 64>}, {pipeline_mode = #tpu.pipeline_mode<synchronous>, transform_indices = @transform_4, window_bounds = array<i64: 64, 64>}, {pipeline_mode = #tpu.pipeline_mode<synchronous>, transform_indices = @transform_5, window_bounds = array<i64: 1, 64>}, {pipeline_mode = #tpu.pipeline_mode<synchronous>, transform_indices = @transform_6, window_bounds = array<i64: 64, 8>}, {pipeline_mode = #tpu.pipeline_mode<synchronous>, transform_indices = @transform_7, window_bounds = array<i64: 1, 8>}, {transform_indices = @transform_8, window_bounds = array<i64: 8, 8>}]} {
    %c0 = arith.constant 0 : index
    %c0_0 = arith.constant 0 : index
    %0 = vector.load %arg1[%c0, %c0_0] : memref<8x16xbf16, #tpu.memory_space<vmem>>, vector<8x16xbf16>
    %c0_1 = arith.constant 0 : index
    %c0_2 = arith.constant 0 : index
    %1 = vector.load %arg3[%c0_1, %c0_2] : memref<16x64xbf16, #tpu.memory_space<vmem>>, vector<16x64xbf16>
    %cst = arith.constant dense<0.000000e+00> : vector<8x64xf32>
    %2 = tpu.matmul %0, %1, %cst {dimension_numbers = #tpu.dot_dimension_numbers<[1], [0], [0], [1], [0, 0, 1, 1], [], []>} : vector<8x16xbf16>, vector<16x64xbf16>, vector<8x64xf32> -> vector<8x64xf32>
    %c0_3 = arith.constant 0 : index
    %c0_4 = arith.constant 0 : index
    %3 = vector.load %arg4[%c0_3, %c0_4] : memref<1x64xf32, #tpu.memory_space<vmem>>, vector<1x64xf32>
    %4 = vector.broadcast %3 : vector<1x64xf32> to vector<8x64xf32>
    %5 = arith.addf %2, %4 : vector<8x64xf32>
    %6 = math.tanh %5 : vector<8x64xf32>
    %7 = arith.truncf %6 : vector<8x64xf32> to vector<8x64xbf16>
    %c0_5 = arith.constant 0 : index
    %c0_6 = arith.constant 0 : index
    %8 = vector.load %arg5[%c0_5, %c0_6] : memref<64x64xbf16, #tpu.memory_space<vmem>>, vector<64x64xbf16>
    %cst_7 = arith.constant dense<0.000000e+00> : vector<8x64xf32>
    %9 = tpu.matmul %7, %8, %cst_7 {dimension_numbers = #tpu.dot_dimension_numbers<[1], [0], [0], [1], [0, 0, 1, 1], [], []>} : vector<8x64xbf16>, vector<64x64xbf16>, vector<8x64xf32> -> vector<8x64xf32>
    %c0_8 = arith.constant 0 : index
    %c0_9 = arith.constant 0 : index
    %10 = vector.load %arg6[%c0_8, %c0_9] : memref<1x64xf32, #tpu.memory_space<vmem>>, vector<1x64xf32>
    %11 = vector.broadcast %10 : vector<1x64xf32> to vector<8x64xf32>
    %12 = arith.addf %9, %11 : vector<8x64xf32>
    %13 = math.tanh %12 : vector<8x64xf32>
    %14 = arith.truncf %13 : vector<8x64xf32> to vector<8x64xbf16>
    %c0_10 = arith.constant 0 : index
    %c0_11 = arith.constant 0 : index
    %15 = vector.load %arg7[%c0_10, %c0_11] : memref<64x8xbf16, #tpu.memory_space<vmem>>, vector<64x8xbf16>
    %cst_12 = arith.constant dense<0.000000e+00> : vector<8x8xf32>
    %16 = tpu.matmul %14, %15, %cst_12 {dimension_numbers = #tpu.dot_dimension_numbers<[1], [0], [0], [1], [0, 0, 1, 1], [], []>} : vector<8x64xbf16>, vector<64x8xbf16>, vector<8x8xf32> -> vector<8x8xf32>
    %c0_13 = arith.constant 0 : index
    %c0_14 = arith.constant 0 : index
    %17 = vector.load %arg8[%c0_13, %c0_14] : memref<1x8xf32, #tpu.memory_space<vmem>>, vector<1x8xf32>
    %18 = vector.broadcast %17 : vector<1x8xf32> to vector<8x8xf32>
    %19 = arith.addf %16, %18 : vector<8x8xf32>
    %c0_15 = arith.constant 0 : index
    %c0_16 = arith.constant 0 : index
    %20 = vector.load %arg2[%c0_15, %c0_16] : memref<8x8xf32, #tpu.memory_space<vmem>>, vector<8x8xf32>
    %21 = vector.extract_strided_slice %20 {offsets = [0, 4], sizes = [8, 1], strides = [1, 1]} : vector<8x8xf32> to vector<8x1xf32>
    %cst_17 = arith.constant 0.000000e+00 : f32
    %22 = vector.broadcast %cst_17 : f32 to vector<8x1xf32>
    %23 = arith.cmpf oeq, %21, %22 : vector<8x1xf32>
    %cst_18 = arith.constant -3.125000e+02 : f32
    %cst_19 = arith.constant -5.000000e+11 : f32
    %24 = vector.broadcast %cst_18 : f32 to vector<8x1xf32>
    %25 = vector.broadcast %cst_19 : f32 to vector<8x1xf32>
    %26 = arith.select %23, %24, %25 : vector<8x1xi1>, vector<8x1xf32>
    %cst_20 = arith.constant 2.29993725 : f32
    %cst_21 = arith.constant 12.8965721 : f32
    %27 = vector.broadcast %cst_20 : f32 to vector<8x1xf32>
    %28 = vector.broadcast %cst_21 : f32 to vector<8x1xf32>
    %29 = arith.select %23, %27, %28 : vector<8x1xi1>, vector<8x1xf32>
    %cst_22 = arith.constant -1.79993725 : f32
    %cst_23 = arith.constant -12.3965721 : f32
    %30 = vector.broadcast %cst_22 : f32 to vector<8x1xf32>
    %31 = vector.broadcast %cst_23 : f32 to vector<8x1xf32>
    %32 = arith.select %23, %30, %31 : vector<8x1xi1>, vector<8x1xf32>
    %33 = arith.subf %20, %19 : vector<8x8xf32>
    %34 = arith.mulf %33, %33 : vector<8x8xf32>
    %35 = vector.broadcast %26 : vector<8x1xf32> to vector<8x8xf32>
    %36 = arith.mulf %34, %35 : vector<8x8xf32>
    %37 = vector.broadcast %29 : vector<8x1xf32> to vector<8x8xf32>
    %38 = arith.addf %36, %37 : vector<8x8xf32>
    %39 = tpu.iota {dimensions = array<i32: 1>} : vector<8x8xi32>
    %c4_i32 = arith.constant 4 : i32
    %40 = vector.broadcast %c4_i32 : i32 to vector<8x8xi32>
    %41 = arith.cmpi slt, %39, %40 : vector<8x8xi32>
    %c4_i32_24 = arith.constant 4 : i32
    %42 = vector.broadcast %c4_i32_24 : i32 to vector<8x8xi32>
    %43 = arith.cmpi eq, %39, %42 : vector<8x8xi32>
    %c5_i32 = arith.constant 5 : i32
    %44 = vector.broadcast %c5_i32 : i32 to vector<8x8xi32>
    %45 = arith.cmpi eq, %39, %44 : vector<8x8xi32>
    %46 = vector.shape_cast %32 : vector<8x1xf32> to vector<8x1xf32>
    %47 = vector.broadcast %46 : vector<8x1xf32> to vector<8x8xf32>
    %cst_25 = arith.constant 0.000000e+00 : f32
    %48 = vector.broadcast %cst_25 : f32 to vector<8x8xf32>
    %49 = arith.select %45, %47, %48 : vector<8x8xi1>, vector<8x8xf32>
    %50 = arith.select %43, %19, %49 : vector<8x8xi1>, vector<8x8xf32>
    %51 = arith.select %41, %38, %50 : vector<8x8xi1>, vector<8x8xf32>
    %c0_26 = arith.constant 0 : index
    %c0_27 = arith.constant 0 : index
    %52 = vector.load %arg9[%c0_26, %c0_27] : memref<8x8xf32, #tpu.memory_space<vmem>>, vector<8x8xf32>
    tpu.vector_store %arg9[%c0_26, %c0_27], %51 {strides = array<i32>} : memref<8x8xf32, #tpu.memory_space<vmem>>, vector<8x8xf32>,
    return
  }
  func.func @transform_0(%arg0: i32) -> (i32, i32) {
    %c0_i32 = arith.constant 0 : i32
    %c0_i32_0 = arith.constant 0 : i32
    return %arg0, %c0_i32 : i32, i32
  }
  func.func @transform_1(%arg0: i32) -> (i32, i32) {
    %c0_i32 = arith.constant 0 : i32
    %c0_i32_0 = arith.constant 0 : i32
    return %arg0, %c0_i32 : i32, i32
  }
  func.func @transform_2(%arg0: i32) -> (i32, i32) {
    %c0_i32 = arith.constant 0 : i32
    %c0_i32_0 = arith.constant 0 : i32
    %c0_i32_1 = arith.constant 0 : i32
    return %c0_i32, %c0_i32_0 : i32, i32
  }
  func.func @transform_3(%arg0: i32) -> (i32, i32) {
    %c0_i32 = arith.constant 0 : i32
    %c0_i32_0 = arith.constant 0 : i32
    %c0_i32_1 = arith.constant 0 : i32
    return %c0_i32, %c0_i32_0 : i32, i32
  }
  func.func @transform_4(%arg0: i32) -> (i32, i32) {
    %c0_i32 = arith.constant 0 : i32
    %c0_i32_0 = arith.constant 0 : i32
    %c0_i32_1 = arith.constant 0 : i32
    return %c0_i32, %c0_i32_0 : i32, i32
  }
  func.func @transform_5(%arg0: i32) -> (i32, i32) {
    %c0_i32 = arith.constant 0 : i32
    %c0_i32_0 = arith.constant 0 : i32
    %c0_i32_1 = arith.constant 0 : i32
    return %c0_i32, %c0_i32_0 : i32, i32
  }
  func.func @transform_6(%arg0: i32) -> (i32, i32) {
    %c0_i32 = arith.constant 0 : i32
    %c0_i32_0 = arith.constant 0 : i32
    %c0_i32_1 = arith.constant 0 : i32
    return %c0_i32, %c0_i32_0 : i32, i32
  }
  func.func @transform_7(%arg0: i32) -> (i32, i32) {
    %c0_i32 = arith.constant 0 : i32
    %c0_i32_0 = arith.constant 0 : i32
    %c0_i32_1 = arith.constant 0 : i32
    return %c0_i32, %c0_i32_0 : i32, i32
  }
  func.func @transform_8(%arg0: i32) -> (i32, i32) {
    %c0_i32 = arith.constant 0 : i32
    %c0_i32_0 = arith.constant 0 : i32
    return %arg0, %c0_i32 : i32, i32
  }
}

</mosaic_0001>

<llo_original>
// kernel: tpu_custom_call.1
$region0: #{tpu_custom_call.1}
  #allocation0 [shape = 'u32[]', space=smem, size = 0x4, offset = 0x4, fixed_abs, tag = 'smem constant byte address 0x4 - core index']
  #allocation1 [shape = 'u32[144,128]{1,0:T(1,128)}', space=vmem, size = 0x12000, scoped, tag = 'internal scratch']
  %s0 = inlined_call_operand.hbm [shape: bf16[8,16], index: 0, kind: input, shape index: {}]
  %s1 = inlined_call_operand.vmem [shape: f32[8,8], index: 1, kind: input, shape index: {}]
  %s2 = inlined_call_operand.hbm [shape: bf16[16,64], index: 2, kind: input, shape index: {}]
  %s3 = inlined_call_operand.vmem [shape: f32[1,64], index: 3, kind: input, shape index: {}]
  %s4 = inlined_call_operand.vmem [shape: bf16[64,64], index: 4, kind: input, shape index: {}]
  %s5 = inlined_call_operand.hbm [shape: f32[1,64], index: 5, kind: input, shape index: {}]
  %s6 = inlined_call_operand.vmem [shape: bf16[64,8], index: 6, kind: input, shape index: {}]
  %s7 = inlined_call_operand.vmem [shape: f32[1,8], index: 7, kind: input, shape index: {}]
  %s8 = inlined_call_operand.hbm [shape: f32[8,8], index: 8, kind: output, shape index: {}]
  %s9 = sld [smem:[#allocation0]]
  $region54: #{tpu_custom_call.1} parent=0
    _
  %s11 = ssub.s32 1, %s9
  %s12 = scalar_select 0, %s11, %s9
  $region1: #{tpu_custom_call.1} parent=0
    #allocation2 [shape = 'u8[2048]{0}', space=vmem, size = 0x800, scoped, tag = 'input window, operand 0, single buffered']
    #allocation3 [shape = 's32[1]{0}', space=sflag, size = 0x4, scoped, tag = 'scoped memory for tpu_custom_call.1']
    #allocation4 [shape = 's32[1]{0}', space=sflag, size = 0x4, scoped, tag = 'scoped memory for tpu_custom_call.1']
    #allocation5 [shape = 'u8[4096]{0}', space=vmem, size = 0x1000, scoped, tag = 'input window, operand 2, single buffered']
    #allocation6 [shape = 's32[1]{0}', space=sflag, size = 0x4, scoped, tag = 'scoped memory for tpu_custom_call.1']
    #allocation7 [shape = 'u8[512]{0}', space=vmem, size = 0x400, scoped, tag = 'input window, operand 5, single buffered']
    #allocation8 [shape = 'u8[4096]{0}', space=vmem, size = 0x1000, scoped, tag = 'output window, operand 0, single buffered']
    %13 = vsyncpa [#allocation3], 0
    %14 = vsyncpa [#allocation6], 0
    %15 = vsyncpa [#allocation4], 0
    // Predicated region
    $region2: #{tpu_custom_call.1} parent=1 // pred_check
      _
    $region3: #{tpu_custom_call.1} parent=1 // pred_check_branch
      %17 = sbr.rel (0) target = $region5
    $region4: #{tpu_custom_call.1} parent=1 // pred_region
      %s19 = ssub.s32 64, 64
      %20 = vsyncadd [#allocation3], %s19
      %s22 = sshll.u32 [#allocation2], 4
      %s23 = int_to_ptr.vmem [resolvable:$true] %s22
      %25 = dma.hbm_to_vmem [thread:$0]  %s0, 64, %s23, [#allocation3]
    $region5: #{tpu_custom_call.1} parent=1 // pred_fallthru
      _
    // Predicated region
    $region6: #{tpu_custom_call.1} parent=1 // pred_check
      _
    $region7: #{tpu_custom_call.1} parent=1 // pred_check_branch
      %27 = sbr.rel (0) target = $region9
    $region8: #{tpu_custom_call.1} parent=1 // pred_region
      _
    $region9: #{tpu_custom_call.1} parent=1 // pred_fallthru
      _
    // Predicated region
    $region10: #{tpu_custom_call.1} parent=1 // pred_check
      _
    $region11: #{tpu_custom_call.1} parent=1 // pred_check_branch
      %29 = sbr.rel (0) target = $region13
    $region12: #{tpu_custom_call.1} parent=1 // pred_region
      %s31 = ssub.s32 128, 128
      %32 = vsyncadd [#allocation6], %s31
      %s33 = sshll.u32 [#allocation5], 4
      %s34 = int_to_ptr.vmem [resolvable:$true] %s33
      %39 = dma.hbm_to_vmem [thread:$0]  %s2, 128, %s34, [#allocation6], 64, 64, 4
    $region13: #{tpu_custom_call.1} parent=1 // pred_fallthru
      _
    // Predicated region
    $region14: #{tpu_custom_call.1} parent=1 // pred_check
      _
    $region15: #{tpu_custom_call.1} parent=1 // pred_check_branch
      %41 = sbr.rel (0) target = $region17
    $region16: #{tpu_custom_call.1} parent=1 // pred_region
      _
    $region17: #{tpu_custom_call.1} parent=1 // pred_fallthru
      _
    // Predicated region
    $region18: #{tpu_custom_call.1} parent=1 // pred_check
      _
    $region19: #{tpu_custom_call.1} parent=1 // pred_check_branch
      %43 = sbr.rel (0) target = $region21
    $region20: #{tpu_custom_call.1} parent=1 // pred_region
      _
    $region21: #{tpu_custom_call.1} parent=1 // pred_fallthru
      _
    // Predicated region
    $region22: #{tpu_custom_call.1} parent=1 // pred_check
      _
    $region23: #{tpu_custom_call.1} parent=1 // pred_check_branch
      %45 = sbr.rel (0) target = $region25
    $region24: #{tpu_custom_call.1} parent=1 // pred_region
      %s47 = ssub.s32 16, 16
      %48 = vsyncadd [#allocation6], %s47
      %s50 = sshll.u32 [#allocation7], 4
      %s51 = int_to_ptr.vmem [resolvable:$true] %s50
      %53 = dma.hbm_to_vmem [thread:$0]  %s5, 16, %s51, [#allocation6]
    $region25: #{tpu_custom_call.1} parent=1 // pred_fallthru
      _
    // Predicated region
    $region26: #{tpu_custom_call.1} parent=1 // pred_check
      _
    $region27: #{tpu_custom_call.1} parent=1 // pred_check_branch
      %55 = sbr.rel (0) target = $region29
    $region28: #{tpu_custom_call.1} parent=1 // pred_region
      _
    $region29: #{tpu_custom_call.1} parent=1 // pred_fallthru
      _
    // Predicated region
    $region30: #{tpu_custom_call.1} parent=1 // pred_check
      _
    $region31: #{tpu_custom_call.1} parent=1 // pred_check_branch
      %57 = sbr.rel (0) target = $region33
    $region32: #{tpu_custom_call.1} parent=1 // pred_region
      _
    $region33: #{tpu_custom_call.1} parent=1 // pred_fallthru
      _
    // Predicated region
    $region34: #{tpu_custom_call.1} parent=1 // pred_check
      _
    $region35: #{tpu_custom_call.1} parent=1 // pred_check_branch
      %59 = sbr.rel (0) target = $region37
    $region36: #{tpu_custom_call.1} parent=1 // pred_region
      %60 = dma.done [#allocation3], 64
    $region37: #{tpu_custom_call.1} parent=1 // pred_fallthru
      _
    // Predicated region
    $region38: #{tpu_custom_call.1} parent=1 // pred_check
      _
    $region39: #{tpu_custom_call.1} parent=1 // pred_check_branch
      %62 = sbr.rel (0) target = $region41
    $region40: #{tpu_custom_call.1} parent=1 // pred_region
      %63 = dma.done [#allocation6], 128
    $region41: #{tpu_custom_call.1} parent=1 // pred_fallthru
      _
    // Predicated region
    $region42: #{tpu_custom_call.1} parent=1 // pred_check
      _
    $region43: #{tpu_custom_call.1} parent=1 // pred_check_branch
      %65 = sbr.rel (0) target = $region45
    $region44: #{tpu_custom_call.1} parent=1 // pred_region
      %66 = dma.done [#allocation6], 16
    $region45: #{tpu_custom_call.1} parent=1 // pred_fallthru
      _
    %v68 = vld [vmem:[#allocation2] sm:$0xf]
    %v69 = vld [vmem:[#allocation5] sm:$0xf]
    %v70 = vld [vmem:[#allocation5 + $0x4] sm:$0xf]
    %v71 = vld [vmem:[%s3] sm:$0x1]
    %v73 = vlaneseq
    %v74 = vshrl.u32 %v73, 7
    %v75 = vsub.s32 0, %v74
    %v76 = vrot.slane %v71, %v75
    %v80 = vunpack.c.l.b16 %v69
    %v81 = vunpack.c.l.b16 %v70
    %v82 = vpack.c.b16 %v81, %v80
    %vm84 = vcmask 130048
    %v86 = vsel %vm84, %v68, 0
    %88 = vmatprep.subr.bf16.mxu0 0
    %89 = vmatpush1.bf16.msra.mxu0 0
    %90 = vmatprep.subr.bf16.mxu0 0
    %91 = vmatpush1.bf16.msra.mxu0 0
    %92 = vmatprep.subr.bf16.mxu0 0
    %93 = vmatpush1.bf16.msra.mxu0 0
    %94 = vmatprep.subr.bf16.mxu0 0
    %95 = vmatpush1.bf16.msra.mxu0 0
    %96 = vmatprep.subr.bf16.mxu0 0
    %97 = vmatpush1.bf16.msra.mxu0 0
    %98 = vmatprep.subr.bf16.mxu0 0
    %99 = vmatpush1.bf16.msra.mxu0 0
    %100 = vmatprep.subr.bf16.mxu0 0
    %101 = vmatpush1.bf16.msra.mxu0 0
    %102 = vmatprep.subr.bf16.mxu0 0
    %103 = vmatpush1.bf16.msra.mxu0 %v82
    %104 = vmatprep.subr.bf16.mxu0 0
    %105 = vmatpush2.bf16.msra.mxu0 0
    %106 = vmatprep.subr.bf16.mxu0 0
    %107 = vmatpush2.bf16.msra.mxu0 0
    %108 = vmatprep.subr.bf16.mxu0 0
    %109 = vmatpush2.bf16.msra.mxu0 0
    %110 = vmatprep.subr.bf16.mxu0 0
    %111 = vmatpush2.bf16.msra.mxu0 0
    %112 = vmatprep.subr.bf16.mxu0 0
    %113 = vmatpush2.bf16.msra.mxu0 0
    %114 = vmatprep.subr.bf16.mxu0 0
    %115 = vmatpush2.bf16.msra.mxu0 0
    %116 = vmatprep.subr.bf16.mxu0 0
    %117 = vmatpush2.bf16.msra.mxu0 0
    %118 = vmatprep.subr.bf16.mxu0 0
    %119 = vmatpush2.bf16.msra.mxu0 0
    %120 = vmatprep.mubr.bf16.mxu0 0
    %121 = vmatmul.mubr.bf16.gmra.mxu0 %v86
    %v122 = vpop.f32.mrf.mxu0
    %v123 = vadd.f32 %v76, %v122
    %v124 = vpop.f32.mrf.mxu0
    %v125 = vpop.f32.mrf.mxu0
    %v126 = vpop.f32.mrf.mxu0
    %127 = vdwg.mxu0
    %v128 = vtanh.pop %v123
    %v129 = vpack.c.bf16 %v128, %v128
    %v130 = vld [vmem:[%s4] sm:$0xf]
    %v131 = vld [vmem:[%s4 + $0x4] sm:$0xf]
    %v132 = vld [vmem:[%s4 + $0x8] sm:$0xf]
    %v133 = vld [vmem:[%s4 + $0xc] sm:$0xf]
    %v134 = vld [vmem:[%s4 + $0x10] sm:$0xf]
    %v135 = vld [vmem:[%s4 + $0x14] sm:$0xf]
    %v136 = vld [vmem:[%s4 + $0x18] sm:$0xf]
    %v137 = vld [vmem:[%s4 + $0x1c] sm:$0xf]
    %v138 = vld [vmem:[#allocation7] sm:$0x1]
    %v140 = vlaneseq
    %v141 = vshrl.u32 %v140, 7
    %v142 = vsub.s32 0, %v141
    %v143 = vrot.slane %v138, %v142
    %v153 = vunpack.c.l.b16 %v130
    %v154 = vunpack.c.l.b16 %v131
    %v155 = vunpack.c.l.b16 %v132
    %v156 = vunpack.c.l.b16 %v133
    %v157 = vunpack.c.l.b16 %v134
    %v158 = vunpack.c.l.b16 %v135
    %v159 = vunpack.c.l.b16 %v136
    %v160 = vunpack.c.l.b16 %v137
    %v161 = vpack.c.b16 %v154, %v153
    %v162 = vpack.c.b16 %v156, %v155
    %v163 = vpack.c.b16 %v158, %v157
    %v164 = vpack.c.b16 %v160, %v159
    %vm169 = vcmask 523264
    %v171 = vsel %vm169, %v129, 0
    %173 = vmatprep.subr.bf16.mxu0 0
    %174 = vmatpush1.bf16.msra.mxu0 0
    %175 = vmatprep.subr.bf16.mxu0 0
    %176 = vmatpush1.bf16.msra.mxu0 0
    %177 = vmatprep.subr.bf16.mxu0 0
    %178 = vmatpush1.bf16.msra.mxu0 0
    %179 = vmatprep.subr.bf16.mxu0 0
    %180 = vmatpush1.bf16.msra.mxu0 0
    %181 = vmatprep.subr.bf16.mxu0 0
    %182 = vmatpush1.bf16.msra.mxu0 %v164
    %183 = vmatprep.subr.bf16.mxu0 0
    %184 = vmatpush1.bf16.msra.mxu0 %v163
    %185 = vmatprep.subr.bf16.mxu0 0
    %186 = vmatpush1.bf16.msra.mxu0 %v162
    %187 = vmatprep.subr.bf16.mxu0 0
    %188 = vmatpush1.bf16.msra.mxu0 %v161
    %189 = vmatprep.subr.bf16.mxu0 0
    %190 = vmatpush2.bf16.msra.mxu0 0
    %191 = vmatprep.subr.bf16.mxu0 0
    %192 = vmatpush2.bf16.msra.mxu0 0
    %193 = vmatprep.subr.bf16.mxu0 0
    %194 = vmatpush2.bf16.msra.mxu0 0
    %195 = vmatprep.subr.bf16.mxu0 0
    %196 = vmatpush2.bf16.msra.mxu0 0
    %197 = vmatprep.subr.bf16.mxu0 0
    %198 = vmatpush2.bf16.msra.mxu0 0
    %199 = vmatprep.subr.bf16.mxu0 0
    %200 = vmatpush2.bf16.msra.mxu0 0
    %201 = vmatprep.subr.bf16.mxu0 0
    %202 = vmatpush2.bf16.msra.mxu0 0
    %203 = vmatprep.subr.bf16.mxu0 0
    %204 = vmatpush2.bf16.msra.mxu0 0
    %205 = vmatprep.mubr.bf16.mxu0 0
    %206 = vmatmul.mubr.bf16.gmra.mxu0 %v171
    %v207 = vpop.f32.mrf.mxu0
    %v208 = vadd.f32 %v143, %v207
    %v209 = vpop.f32.mrf.mxu0
    %v210 = vpop.f32.mrf.mxu0
    %v211 = vpop.f32.mrf.mxu0
    %212 = vdwg.mxu0
    %v213 = vtanh.pop %v208
    %v214 = vpack.c.bf16 %v213, %v213
    %v215 = vld [vmem:[%s6] sm:$0xf]
    %v216 = vld [vmem:[%s6 + $0x4] sm:$0xf]
    %v217 = vld [vmem:[%s6 + $0x8] sm:$0xf]
    %v218 = vld [vmem:[%s6 + $0xc] sm:$0xf]
    %v219 = vld [vmem:[%s6 + $0x10] sm:$0xf]
    %v220 = vld [vmem:[%s6 + $0x14] sm:$0xf]
    %v221 = vld [vmem:[%s6 + $0x18] sm:$0xf]
    %v222 = vld [vmem:[%s6 + $0x1c] sm:$0xf]
    %v223 = vld [vmem:[%s7] sm:$0x1]
    %v225 = vlaneseq
    %v226 = vshrl.u32 %v225, 7
    %v227 = vsub.s32 0, %v226
    %v228 = vrot.slane %v223, %v227
    %v238 = vunpack.c.l.b16 %v215
    %v239 = vunpack.c.l.b16 %v216
    %v240 = vunpack.c.l.b16 %v217
    %v241 = vunpack.c.l.b16 %v218
    %v242 = vunpack.c.l.b16 %v219
    %v243 = vunpack.c.l.b16 %v220
    %v244 = vunpack.c.l.b16 %v221
    %v245 = vunpack.c.l.b16 %v222
    %v246 = vpack.c.b16 %v239, %v238
    %v247 = vpack.c.b16 %v241, %v240
    %v248 = vpack.c.b16 %v243, %v242
    %v249 = vpack.c.b16 %v245, %v244
    %v255 = vsel %vm169, %v214, 0
    %257 = vmatprep.subr.bf16.mxu0 0
    %258 = vmatpush1.bf16.msra.mxu0 0
    %259 = vmatprep.subr.bf16.mxu0 0
    %260 = vmatpush1.bf16.msra.mxu0 0
    %261 = vmatprep.subr.bf16.mxu0 0
    %262 = vmatpush1.bf16.msra.mxu0 0
    %263 = vmatprep.subr.bf16.mxu0 0
    %264 = vmatpush1.bf16.msra.mxu0 0
    %265 = vmatprep.subr.bf16.mxu0 0
    %266 = vmatpush1.bf16.msra.mxu0 %v249
    %267 = vmatprep.subr.bf16.mxu0 0
    %268 = vmatpush1.bf16.msra.mxu0 %v248
    %269 = vmatprep.subr.bf16.mxu0 0
    %270 = vmatpush1.bf16.msra.mxu0 %v247
    %271 = vmatprep.subr.bf16.mxu0 0
    %272 = vmatpush1.bf16.msra.mxu0 %v246
    %273 = vmatprep.subr.bf16.mxu0 0
    %274 = vmatpush2.bf16.msra.mxu0 0
    %275 = vmatprep.subr.bf16.mxu0 0
    %276 = vmatpush2.bf16.msra.mxu0 0
    %277 = vmatprep.subr.bf16.mxu0 0
    %278 = vmatpush2.bf16.msra.mxu0 0
    %279 = vmatprep.subr.bf16.mxu0 0
    %280 = vmatpush2.bf16.msra.mxu0 0
    %281 = vmatprep.subr.bf16.mxu0 0
    %282 = vmatpush2.bf16.msra.mxu0 0
    %283 = vmatprep.subr.bf16.mxu0 0
    %284 = vmatpush2.bf16.msra.mxu0 0
    %285 = vmatprep.subr.bf16.mxu0 0
    %286 = vmatpush2.bf16.msra.mxu0 0
    %287 = vmatprep.subr.bf16.mxu0 0
    %288 = vmatpush2.bf16.msra.mxu0 0
    %289 = vmatprep.mubr.bf16.mxu0 0
    %290 = vmatmul.mubr.bf16.gmra.mxu0 %v255
    %v291 = vpop.f32.mrf.mxu0
    %v292 = vadd.f32 %v228, %v291
    %v293 = vpop.f32.mrf.mxu0
    %v294 = vpop.f32.mrf.mxu0
    %v295 = vpop.f32.mrf.mxu0
    %296 = vdwg.mxu0
    %v297 = vld [vmem:[%s1] sm:$0xff]
    %vm298 = vcmp.eq.f32.partialorder %v297, 0.0
    %v299 = vsel %vm298, -312.5, -5e+11
    %v300 = vsel %vm298, 2.2999372, 12.896572
    %v301 = vsel %vm298, -1.7999372, -12.396572
    %v302 = vsub.f32 %v297, %v292
    %v303 = vmul.f32 %v302, %v302
    %305 = vset.pattern.permute.xlu0 4
    %306 = vperm.xlu0 %305, %v299
    %v307 = vpop.permute.xlu0 %306
    %v309 = vmul.f32 %v303, %v307
    %311 = vset.pattern.permute.xlu0 4
    %312 = vperm.xlu0 %311, %v300
    %v313 = vpop.permute.xlu0 %312
    %v315 = vadd.f32 %v309, %v313
    %v316 = vlaneseq
    %v317 = vand.u32 %v316, 127
    %vm318 = vcmp.lt.s32.totalorder %v317, 4
    %vm319 = vcmp.eq.s32.totalorder %v317, 4
    %vm320 = vcmp.eq.s32.totalorder %v317, 5
    %322 = vset.pattern.permute.xlu0 4
    %323 = vperm.xlu0 %322, %v301
    %v324 = vpop.permute.xlu0 %323
    %v326 = vsel %vm320, %v324, 0.0
    %v327 = vsel %vm319, %v292, %v326
    %v328 = vsel %vm318, %v315, %v327
    %vm329 = vcmask 64512
    %330 = vst.msk [vmem:[#allocation8] sm:$0xff] %vm329, %v328
    // Predicated region
    $region46: #{tpu_custom_call.1} parent=1 // pred_check
      _
    $region47: #{tpu_custom_call.1} parent=1 // pred_check_branch
      %332 = sbr.rel (0) target = $region49
    $region48: #{tpu_custom_call.1} parent=1 // pred_region
      %s334 = ssub.s32 128, 128
      %335 = vsyncadd [#allocation4], %s334
      %s337 = sshll.u32 [#allocation8], 4
      %s338 = int_to_ptr.vmem [resolvable:$true] %s337
      %340 = dma.vmem_to_hbm [thread:$0]  %s338, 128, %s8, [#allocation4]
    $region49: #{tpu_custom_call.1} parent=1 // pred_fallthru
      _
    // Predicated region
    $region50: #{tpu_custom_call.1} parent=1 // pred_check
      _
    $region51: #{tpu_custom_call.1} parent=1 // pred_check_branch
      %342 = sbr.rel (0) target = $region53
    $region52: #{tpu_custom_call.1} parent=1 // pred_region
      %343 = dma.done [#allocation4], 128
    $region53: #{tpu_custom_call.1} parent=1 // pred_fallthru
      _
    %344 = vsyncpa [#allocation3], 1
    %345 = vsyncpa [#allocation6], 1
    %346 = vsyncpa [#allocation4], 1

</llo_original>
